<compile_context>
chip_gen: v5e
topology: v5e:2x2
jax: 0.10.0
libtpu: 0.0.40
codegen_flags: <defaults>
</compile_context>

<pallas_src>
import functools

import jax
import jax.numpy as jnp
from jax.experimental import pallas as pl
from jax.experimental.pallas import tpu as pltpu


def _gelu_kernel(x_ref, o_ref, *, compute_dtype):
    x = x_ref[...].astype(compute_dtype)
    # x * sigmoid(1.702 x) == x * 0.5 * (tanh(0.851 x) + 1): single EUP
    # transcendental, no divide on the VALU.
    y = x * (0.5 * (jnp.tanh(0.851 * x) + 1.0))
    o_ref[...] = y.astype(o_ref.dtype)


def _tpu_generation() -> int:
    """Best-effort TPU generation from device_kind ('TPU v5e' -> 5, ...)."""
    try:
        kind = jax.devices()[0].device_kind.lower()
    except Exception:
        return 0
    for g in (7, 6, 5, 4):
        if f"v{g}" in kind:
            return g
    return 0


# Per-generation target block size (bytes). 2x(in+out) double-buffered blocks
# must stay under the scoped-VMEM default (v5e 16 MiB, v6e/v7x 32 MiB).
_BLOCK_BYTES = {7: 6 << 20, 6: 4 << 20, 5: 2 << 20}


def gelu_pallas(x: jax.Array) -> jax.Array:
    """Elementwise GELU (x * sigmoid(1.702 x)) via a Pallas TPU kernel."""
    orig_shape = x.shape
    dtype = x.dtype
    n = x.size
    if n == 0:
        return x

    gen = _tpu_generation()
    block_bytes = _BLOCK_BYTES.get(gen, 2 << 20)
    itemsize = jnp.dtype(dtype).itemsize

    # bf16-native compute on bf16-capable VPU/EUP (v6e/v7x); f32 elsewhere.
    if dtype == jnp.bfloat16 and gen >= 6:
        compute_dtype = jnp.bfloat16
    else:
        compute_dtype = jnp.float32

    kernel = functools.partial(_gelu_kernel, compute_dtype=compute_dtype)
    cost = pl.CostEstimate(
        flops=4 * n, transcendentals=n, bytes_accessed=2 * n * itemsize)
    # TODO(synk): on v7x, confirm with xprof that the 1-D "parallel" grid is
    # sharded across both TensorCores; if one TC idles, switch this axis to
    # pltpu.CORE_PARALLEL and prefer an even number of grid steps.
    cparams = pltpu.CompilerParams(dimension_semantics=("parallel",))

    flat = x.reshape(-1)

    if n % 128 == 0:
        # ---- Fast path: lane-dense 2-D slab, zero-copy reshapes. ----
        lanes = next(w for w in (1024, 512, 256, 128) if n % w == 0)
        rows = n // lanes
        # Minimum sublane tile for the packed dtype (f32:8, bf16:16, int8:32).
        sublane = {4: 8, 2: 16, 1: 32}.get(itemsize, 8)
        target_rows = max(
            sublane, (block_bytes // (lanes * itemsize)) // sublane * sublane)
        # Single full-extent block for small inputs; otherwise sublane-aligned
        # blocks (ragged last block handled by Pallas masking).
        block_rows = rows if rows <= target_rows else target_rows
        grid = (pl.cdiv(rows, block_rows),)

        out = pl.pallas_call(
            kernel,
            out_shape=jax.ShapeDtypeStruct((rows, lanes), dtype),
            grid_spec=pltpu.PrefetchScalarGridSpec(
                num_scalar_prefetch=0,
                grid=grid,
                in_specs=[pl.BlockSpec((block_rows, lanes), lambda i: (i, 0))],
                out_specs=pl.BlockSpec((block_rows, lanes), lambda i: (i, 0)),
            ),
            compiler_params=cparams,
            cost_estimate=cost,
        )(flat.reshape(rows, lanes))
        return out.reshape(orig_shape)

    # ---- Ragged path (n % 128 != 0): no pad/concat or strip-slice HBM passes.
    # 1-D kernel over the flat array. Small inputs: single full-extent block
    # (full-extent blocks are exempt from the (8,128) rule). Larger inputs:
    # 1024-element-aligned blocks; the partial final block is masked by Pallas.
    block_elems = max(1024, (block_bytes // itemsize) // 1024 * 1024)
    if n <= block_elems:
        block_elems = n
    grid = (pl.cdiv(n, block_elems),)

    out = pl.pallas_call(
        kernel,
        out_shape=jax.ShapeDtypeStruct((n,), dtype),
        grid_spec=pltpu.PrefetchScalarGridSpec(
            num_scalar_prefetch=0,
            grid=grid,
            in_specs=[pl.BlockSpec((block_elems,), lambda i: (i,))],
            out_specs=pl.BlockSpec((block_elems,), lambda i: (i,)),
        ),
        compiler_params=cparams,
        cost_estimate=cost,
    )(flat)
    return out.reshape(orig_shape)


if __name__ == "__main__":
    key = jax.random.PRNGKey(0)

    # NCHW input, small shape consistent with a conv-VAE activation (fast path).
    x = jax.random.normal(key, (2, 4, 16, 16), dtype=jnp.float32)
    y = gelu_pallas(x)
    jax.block_until_ready(y)
    y_ref = x * jax.nn.sigmoid(1.702 * x)
    assert y.shape == x.shape and y.dtype == x.dtype
    assert jnp.max(jnp.abs(y - y_ref)) < 1e-5

    # Ragged-size sanity check (exercises the 1-D no-pad path).
    x2 = jax.random.normal(jax.random.PRNGKey(1), (3, 5, 7, 11), dtype=jnp.float32)
    y2 = gelu_pallas(x2)
    jax.block_until_ready(y2)
    y2_ref = x2 * jax.nn.sigmoid(1.702 * x2)
    assert y2.shape == x2.shape and y2.dtype == x2.dtype
    assert jnp.max(jnp.abs(y2 - y2_ref)) < 1e-5

    # bf16 sanity check (bf16-native compute on v6e/v7x, f32 upcast elsewhere).
    x3 = jax.random.normal(jax.random.PRNGKey(2), (2, 4, 16, 16), dtype=jnp.bfloat16)
    y3 = gelu_pallas(x3)
    jax.block_until_ready(y3)
    x3f = x3.astype(jnp.float32)
    y3_ref = x3f * jax.nn.sigmoid(1.702 * x3f)
    assert y3.shape == x3.shape and y3.dtype == x3.dtype
    assert jnp.max(jnp.abs(y3.astype(jnp.float32) - y3_ref)) < 1e-1

    print("KERNEL_OK")
</pallas_src>

<mosaic_0001>
module attributes {stable_mosaic.version = 11 : i64} {
  func.func @_gelu_kernel(%arg0: i32, %arg1: memref<2x1024xf32, #tpu.memory_space<vmem>>, %arg2: memref<2x1024xf32, #tpu.memory_space<vmem>>) attributes {dimension_semantics = [#tpu.dimension_semantics<parallel>], iteration_bounds = array<i64: 1>, scalar_prefetch = 0 : i64, scratch_operands = 0 : i64, tpu.core_type = #tpu.core_type<tc>, window_params = [{transform_indices = @transform_0, window_bounds = array<i64: 2, 1024>}, {transform_indices = @transform_1, window_bounds = array<i64: 2, 1024>}]} {
    %c0 = arith.constant 0 : index
    %c0_0 = arith.constant 0 : index
    %0 = vector.load %arg1[%c0, %c0_0] : memref<2x1024xf32, #tpu.memory_space<vmem>>, vector<2x1024xf32>
    %cst = arith.constant 8.510000e-01 : f32
    %1 = vector.broadcast %cst : f32 to vector<2x1024xf32>
    %2 = arith.mulf %1, %0 : vector<2x1024xf32>
    %3 = math.tanh %2 : vector<2x1024xf32>
    %cst_1 = arith.constant 1.000000e+00 : f32
    %4 = vector.broadcast %cst_1 : f32 to vector<2x1024xf32>
    %5 = arith.addf %3, %4 : vector<2x1024xf32>
    %cst_2 = arith.constant 5.000000e-01 : f32
    %6 = vector.broadcast %cst_2 : f32 to vector<2x1024xf32>
    %7 = arith.mulf %6, %5 : vector<2x1024xf32>
    %8 = arith.mulf %0, %7 : vector<2x1024xf32>
    %c0_3 = arith.constant 0 : index
    %c0_4 = arith.constant 0 : index
    %9 = vector.load %arg2[%c0_3, %c0_4] : memref<2x1024xf32, #tpu.memory_space<vmem>>, vector<2x1024xf32>
    tpu.vector_store %arg2[%c0_3, %c0_4], %8 {strides = array<i32>} : memref<2x1024xf32, #tpu.memory_space<vmem>>, vector<2x1024xf32>,
    return
  }
  func.func @transform_0(%arg0: i32) -> (i32, i32) {
    %c0_i32 = arith.constant 0 : i32
    %c0_i32_0 = arith.constant 0 : i32
    return %arg0, %c0_i32 : i32, i32
  }
  func.func @transform_1(%arg0: i32) -> (i32, i32) {
    %c0_i32 = arith.constant 0 : i32
    %c0_i32_0 = arith.constant 0 : i32
    return %arg0, %c0_i32 : i32, i32
  }
}

</mosaic_0001>

<llo_original>
// kernel: tpu_custom_call.1
$region0: #{tpu_custom_call.1}
  #allocation0 [shape = 'u32[]', space=smem, size = 0x4, offset = 0x4, fixed_abs, tag = 'smem constant byte address 0x4 - core index']
  #allocation1 [shape = 'u32[72,128]{1,0:T(1,128)}', space=vmem, size = 0x9000, scoped, tag = 'internal scratch']
  %s0 = inlined_call_operand.hbm [shape: f32[2,1024], index: 0, kind: input, shape index: {}]
  %s1 = inlined_call_operand.hbm [shape: f32[2,1024], index: 1, kind: output, shape index: {}]
  %s2 = sld [smem:[#allocation0]]
  $region18: #{tpu_custom_call.1} parent=0
    _
  %s4 = ssub.s32 1, %s2
  %s5 = scalar_select 0, %s4, %s2
  $region1: #{tpu_custom_call.1} parent=0
    #allocation2 [shape = 'u8[8192]{0}', space=vmem, size = 0x2000, scoped, tag = 'input window, operand 0, single buffered']
    #allocation3 [shape = 's32[1]{0}', space=sflag, size = 0x4, scoped, tag = 'scoped memory for tpu_custom_call.1']
    #allocation4 [shape = 's32[1]{0}', space=sflag, size = 0x4, scoped, tag = 'scoped memory for tpu_custom_call.1']
    #allocation5 [shape = 'u8[8192]{0}', space=vmem, size = 0x2000, scoped, tag = 'output window, operand 0, single buffered']
    %6 = vsyncpa [#allocation3], 0
    %7 = vsyncpa [#allocation4], 0
    // Predicated region
    $region2: #{tpu_custom_call.1} parent=1 // pred_check
      _
    $region3: #{tpu_custom_call.1} parent=1 // pred_check_branch
      %9 = sbr.rel (0) target = $region5
    $region4: #{tpu_custom_call.1} parent=1 // pred_region
      %11 = vsyncadd [#allocation3], 0
      %s13 = sshll.u32 %s0, 4
      %s14 = int_to_ptr.hbm [resolvable:$true] %s13
      %s15 = sshll.u32 [#allocation2], 4
      %s16 = int_to_ptr.vmem [resolvable:$true] %s15
      %18 = dma.hbm_to_vmem [thread:$0]  %s14, 256, %s16, [#allocation3]
    $region5: #{tpu_custom_call.1} parent=1 // pred_fallthru
      _
    // Predicated region
    $region6: #{tpu_custom_call.1} parent=1 // pred_check
      _
    $region7: #{tpu_custom_call.1} parent=1 // pred_check_branch
      %20 = sbr.rel (0) target = $region9
    $region8: #{tpu_custom_call.1} parent=1 // pred_region
      %22 = dma.done [#allocation3], 256
    $region9: #{tpu_custom_call.1} parent=1 // pred_fallthru
      _
    %v23 = vld [vmem:[#allocation2] sm:$0xff]
    %v24 = vld [vmem:[#allocation2 + $0x8] sm:$0xff]
    %v25 = vmul.f32 %v23, 0.851
    %v26 = vmul.f32 %v24, 0.851
    %v27 = vtanh.pop %v25
    %v28 = vtanh.pop %v26
    %v29 = vadd.f32 %v27, 1.0
    %v30 = vadd.f32 %v28, 1.0
    %v31 = vmul.f32 %v29, 0.5
    %v32 = vmul.f32 %v30, 0.5
    %v33 = vmul.f32 %v23, %v31
    %v34 = vmul.f32 %v24, %v32
    %35 = vst [vmem:[#allocation5] sm:$0xff] %v33
    %36 = vst [vmem:[#allocation5 + $0x8] sm:$0xff] %v34
    // Predicated region
    $region10: #{tpu_custom_call.1} parent=1 // pred_check
      _
    $region11: #{tpu_custom_call.1} parent=1 // pred_check_branch
      %38 = sbr.rel (0) target = $region13
    $region12: #{tpu_custom_call.1} parent=1 // pred_region
      %40 = vsyncadd [#allocation4], 0
      %s42 = sshll.u32 [#allocation5], 4
      %s43 = int_to_ptr.vmem [resolvable:$true] %s42
      %s44 = sshll.u32 %s1, 4
      %s45 = int_to_ptr.hbm [resolvable:$true] %s44
      %47 = dma.vmem_to_hbm [thread:$0]  %s43, 256, %s45, [#allocation4]
    $region13: #{tpu_custom_call.1} parent=1 // pred_fallthru
      _
    // Predicated region
    $region14: #{tpu_custom_call.1} parent=1 // pred_check
      _
    $region15: #{tpu_custom_call.1} parent=1 // pred_check_branch
      %49 = sbr.rel (0) target = $region17
    $region16: #{tpu_custom_call.1} parent=1 // pred_region
      %51 = dma.done [#allocation4], 256
    $region17: #{tpu_custom_call.1} parent=1 // pred_fallthru
      _
    %52 = vsyncpa [#allocation3], 1
    %53 = vsyncpa [#allocation4], 1

</llo_original>
